<compile_context>
chip_gen: v6e
topology: v6e:2x2x1
jax: 0.10.0
libtpu: 0.0.40
codegen_flags: <defaults>
</compile_context>

<pallas_src>
import math
import functools

import jax
import jax.numpy as jnp
from jax.experimental import pallas as pl
from jax.experimental.pallas import tpu as pltpu


def _lstm_cell_kernel(x_ref, hx_ref, cx_ref, wx_ref, wh_ref, b_ref,
                      hy_ref, cy_ref, *, hidden_size):
    """x_ref:(TB,I) hx_ref:(TB,H) cx_ref:(TB,H) wx_ref:(I,4H) wh_ref:(H,4H) b_ref:(1,4H)."""
    H = hidden_size

    # gates = x @ Wx^T + b_x + h @ Wh^T + b_h  (weights pre-transposed, biases pre-summed).
    gates = jnp.dot(x_ref[...], wx_ref[...], preferred_element_type=jnp.float32)
    gates = gates + jnp.dot(hx_ref[...], wh_ref[...], preferred_element_type=jnp.float32)
    gates = gates + b_ref[...]

    # torch.split(gates, H, dim=1) order: ingate, forgetgate, cellgate, outgate.
    ingate     = jax.nn.sigmoid(gates[:, 0 * H:1 * H])
    forgetgate = jax.nn.sigmoid(gates[:, 1 * H:2 * H])
    cellgate   = jnp.tanh(gates[:, 2 * H:3 * H])
    outgate    = jax.nn.sigmoid(gates[:, 3 * H:4 * H])

    cx = cx_ref[...].astype(jnp.float32)
    cy = cx * forgetgate + ingate * cellgate
    hy = outgate * jnp.tanh(cy)

    cy_ref[...] = cy.astype(cy_ref.dtype)
    hy_ref[...] = hy.astype(hy_ref.dtype)


def _round_up(v, m):
    return (v + m - 1) // m * m


def lstm_cell_forward(x, hidden, params, *, block_b=256, matmul_dtype=jnp.bfloat16):
    """LSTMCell.forward. x: (B, input_size); hidden = (hx, cx), each (B, hidden_size).

    params holds torch-layout tensors:
      w_x2h (4H, I), b_x2h (4H,), w_h2h (4H, H), b_h2h (4H,)
    Returns (hy, cy), each (B, H) float32.
    """
    B, I = x.shape
    w_x2h, b_x2h = params["w_x2h"], params["b_x2h"]
    w_h2h, b_h2h = params["w_h2h"], params["b_h2h"]
    H = w_h2h.shape[1]

    if hidden is None:
        # TODO(synk): reference code has `torch.zeors_like(x)` (typo + wrong shape when
        # input_size != hidden_size); we implement the intended zero initial state (B, H).
        hx = jnp.zeros((B, H), jnp.float32)
        cx = jnp.zeros((B, H), jnp.float32)
    else:
        hx, cx = hidden

    # One-time parameter prep: torch nn.Linear stores weight as (out, in) -> (in, out),
    # and the two biases always appear summed, so fuse them.
    # TODO(synk): Linear_fw "fast weight" (weight.fast/bias.fast) path just swaps which
    # parameter tensors are used; pass those tensors in `params` if FWT is active.
    wx = jnp.transpose(w_x2h).astype(matmul_dtype)            # (I, 4H)
    wh = jnp.transpose(w_h2h).astype(matmul_dtype)            # (H, 4H)
    bias = (b_x2h + b_h2h).reshape(1, 4 * H).astype(jnp.float32)

    x_m = x.astype(matmul_dtype)
    hx_m = hx.astype(matmul_dtype)
    cx_f = cx.astype(jnp.float32)

    # Batch tiling: sublane-align (multiple of 8) and tile so large batches pipeline
    # and (on v7x) split across the two TensorCores.
    Bp = _round_up(B, 8)
    TB = min(block_b, Bp)
    Bp = _round_up(Bp, TB)
    if Bp != B:
        pad = Bp - B
        x_m = jnp.pad(x_m, ((0, pad), (0, 0)))
        hx_m = jnp.pad(hx_m, ((0, pad), (0, 0)))
        cx_f = jnp.pad(cx_f, ((0, pad), (0, 0)))

    hy, cy = pl.pallas_call(
        functools.partial(_lstm_cell_kernel, hidden_size=H),
        out_shape=(jax.ShapeDtypeStruct((Bp, H), jnp.float32),
                   jax.ShapeDtypeStruct((Bp, H), jnp.float32)),
        grid=(Bp // TB,),
        in_specs=[
            pl.BlockSpec((TB, I), lambda b: (b, 0)),          # x tile
            pl.BlockSpec((TB, H), lambda b: (b, 0)),          # hx tile
            pl.BlockSpec((TB, H), lambda b: (b, 0)),          # cx tile
            pl.BlockSpec((I, 4 * H), lambda b: (0, 0)),       # Wx: constant block, stays in VMEM
            pl.BlockSpec((H, 4 * H), lambda b: (0, 0)),       # Wh: constant block, stays in VMEM
            pl.BlockSpec((1, 4 * H), lambda b: (0, 0)),       # fused bias
        ],
        out_specs=(pl.BlockSpec((TB, H), lambda b: (b, 0)),
                   pl.BlockSpec((TB, H), lambda b: (b, 0))),
        compiler_params=pltpu.CompilerParams(
            dimension_semantics=("parallel",)),
    )(x_m, hx_m, cx_f, wx, wh, bias)

    if Bp != B:
        hy = hy[:B]
        cy = cy[:B]
    return hy, cy


def init_params(input_size, hidden_size, key):
    """Matches LSTMCell.reset_parameters(): every parameter ~ U(-1/sqrt(H), 1/sqrt(H))."""
    std = 1.0 / math.sqrt(hidden_size)
    k1, k2, k3, k4 = jax.random.split(key, 4)
    return {
        "w_x2h": jax.random.uniform(k1, (4 * hidden_size, input_size), jnp.float32, -std, std),
        "b_x2h": jax.random.uniform(k2, (4 * hidden_size,), jnp.float32, -std, std),
        "w_h2h": jax.random.uniform(k3, (4 * hidden_size, hidden_size), jnp.float32, -std, std),
        "b_h2h": jax.random.uniform(k4, (4 * hidden_size,), jnp.float32, -std, std),
    }


def _reference_lstm_cell(x, hx, cx, params):
    """Pure-JAX f32 reference of the PyTorch forward, for a sanity check."""
    gates = x @ params["w_x2h"].T + params["b_x2h"] + hx @ params["w_h2h"].T + params["b_h2h"]
    H = params["w_h2h"].shape[1]
    i, f, g, o = jnp.split(gates, 4, axis=1)
    i, f, g, o = jax.nn.sigmoid(i), jax.nn.sigmoid(f), jnp.tanh(g), jax.nn.sigmoid(o)
    cy = cx * f + i * g
    hy = o * jnp.tanh(cy)
    return hy, cy


if __name__ == "__main__":
    key = jax.random.PRNGKey(0)
    key, kx, kh, kc, kp = jax.random.split(key, 5)

    # Small, lane/sublane-friendly shapes: batch=8, input_size=128, hidden_size=128.
    B, I, H = 8, 128, 128
    x = jax.random.normal(kx, (B, I), jnp.float32)
    hx = jax.random.normal(kh, (B, H), jnp.float32)
    cx = jax.random.normal(kc, (B, H), jnp.float32)
    params = init_params(I, H, kp)

    fwd = jax.jit(lambda xx, hh, cc: lstm_cell_forward(xx, (hh, cc), params))
    hy, cy = jax.block_until_ready(fwd(x, hx, cx))
    assert hy.shape == (B, H) and cy.shape == (B, H)
    assert hy.dtype == jnp.float32 and cy.dtype == jnp.float32

    # Sanity check vs. pure-JAX reference (bf16 matmul operands -> loose tolerance).
    hy_ref, cy_ref = _reference_lstm_cell(x, hx, cx, params)
    assert jnp.max(jnp.abs(hy - hy_ref)) < 5e-2
    assert jnp.max(jnp.abs(cy - cy_ref)) < 5e-2

    print("KERNEL_OK")
</pallas_src>

<mosaic_0001>
module attributes {stable_mosaic.version = 11 : i64} {
  func.func @_lstm_cell_kernel(%arg0: i32, %arg1: memref<8x128xbf16, #tpu.memory_space<vmem>>, %arg2: memref<8x128xbf16, #tpu.memory_space<vmem>>, %arg3: memref<8x128xf32, #tpu.memory_space<vmem>>, %arg4: memref<128x512xbf16, #tpu.memory_space<vmem>>, %arg5: memref<128x512xbf16, #tpu.memory_space<vmem>>, %arg6: memref<1x512xf32, #tpu.memory_space<vmem>>, %arg7: memref<8x128xf32, #tpu.memory_space<vmem>>, %arg8: memref<8x128xf32, #tpu.memory_space<vmem>>) attributes {dimension_semantics = [#tpu.dimension_semantics<parallel>], iteration_bounds = array<i64: 1>, scalar_prefetch = 0 : i64, scratch_operands = 0 : i64, tpu.core_type = #tpu.core_type<tc>, window_params = [{transform_indices = @transform_0, window_bounds = array<i64: 8, 128>}, {transform_indices = @transform_1, window_bounds = array<i64: 8, 128>}, {transform_indices = @transform_2, window_bounds = array<i64: 8, 128>}, {pipeline_mode = #tpu.pipeline_mode<synchronous>, transform_indices = @transform_3, window_bounds = array<i64: 128, 512>}, {pipeline_mode = #tpu.pipeline_mode<synchronous>, transform_indices = @transform_4, window_bounds = array<i64: 128, 512>}, {pipeline_mode = #tpu.pipeline_mode<synchronous>, transform_indices = @transform_5, window_bounds = array<i64: 1, 512>}, {transform_indices = @transform_6, window_bounds = array<i64: 8, 128>}, {transform_indices = @transform_7, window_bounds = array<i64: 8, 128>}]} {
    %c0 = arith.constant 0 : index
    %c0_0 = arith.constant 0 : index
    %0 = vector.load %arg1[%c0, %c0_0] : memref<8x128xbf16, #tpu.memory_space<vmem>>, vector<8x128xbf16>
    %c0_1 = arith.constant 0 : index
    %c0_2 = arith.constant 0 : index
    %1 = vector.load %arg4[%c0_1, %c0_2] : memref<128x512xbf16, #tpu.memory_space<vmem>>, vector<128x512xbf16>
    %cst = arith.constant dense<0.000000e+00> : vector<8x512xf32>
    %2 = tpu.matmul %0, %1, %cst {dimension_numbers = #tpu.dot_dimension_numbers<[1], [0], [0], [1], [0, 0, 1, 1], [], []>} : vector<8x128xbf16>, vector<128x512xbf16>, vector<8x512xf32> -> vector<8x512xf32>
    %c0_3 = arith.constant 0 : index
    %c0_4 = arith.constant 0 : index
    %3 = vector.load %arg2[%c0_3, %c0_4] : memref<8x128xbf16, #tpu.memory_space<vmem>>, vector<8x128xbf16>
    %c0_5 = arith.constant 0 : index
    %c0_6 = arith.constant 0 : index
    %4 = vector.load %arg5[%c0_5, %c0_6] : memref<128x512xbf16, #tpu.memory_space<vmem>>, vector<128x512xbf16>
    %cst_7 = arith.constant dense<0.000000e+00> : vector<8x512xf32>
    %5 = tpu.matmul %3, %4, %cst_7 {dimension_numbers = #tpu.dot_dimension_numbers<[1], [0], [0], [1], [0, 0, 1, 1], [], []>} : vector<8x128xbf16>, vector<128x512xbf16>, vector<8x512xf32> -> vector<8x512xf32>
    %6 = arith.addf %2, %5 : vector<8x512xf32>
    %c0_8 = arith.constant 0 : index
    %c0_9 = arith.constant 0 : index
    %7 = vector.load %arg6[%c0_8, %c0_9] : memref<1x512xf32, #tpu.memory_space<vmem>>, vector<1x512xf32>
    %8 = vector.broadcast %7 : vector<1x512xf32> to vector<8x512xf32>
    %9 = arith.addf %6, %8 : vector<8x512xf32>
    %10 = vector.extract_strided_slice %9 {offsets = [0, 0], sizes = [8, 128], strides = [1, 1]} : vector<8x512xf32> to vector<8x128xf32>
    %11 = arith.negf %10 : vector<8x128xf32>
    %12 = math.exp %11 : vector<8x128xf32>
    %cst_10 = arith.constant 1.000000e+00 : f32
    %13 = vector.broadcast %cst_10 : f32 to vector<8x128xf32>
    %14 = arith.addf %13, %12 : vector<8x128xf32>
    %15 = arith.divf %13, %14 : vector<8x128xf32>
    %16 = vector.extract_strided_slice %9 {offsets = [0, 128], sizes = [8, 128], strides = [1, 1]} : vector<8x512xf32> to vector<8x128xf32>
    %17 = arith.negf %16 : vector<8x128xf32>
    %18 = math.exp %17 : vector<8x128xf32>
    %cst_11 = arith.constant 1.000000e+00 : f32
    %19 = vector.broadcast %cst_11 : f32 to vector<8x128xf32>
    %20 = arith.addf %19, %18 : vector<8x128xf32>
    %21 = arith.divf %19, %20 : vector<8x128xf32>
    %22 = vector.extract_strided_slice %9 {offsets = [0, 256], sizes = [8, 128], strides = [1, 1]} : vector<8x512xf32> to vector<8x128xf32>
    %23 = math.tanh %22 : vector<8x128xf32>
    %24 = vector.extract_strided_slice %9 {offsets = [0, 384], sizes = [8, 128], strides = [1, 1]} : vector<8x512xf32> to vector<8x128xf32>
    %25 = arith.negf %24 : vector<8x128xf32>
    %26 = math.exp %25 : vector<8x128xf32>
    %cst_12 = arith.constant 1.000000e+00 : f32
    %27 = vector.broadcast %cst_12 : f32 to vector<8x128xf32>
    %28 = arith.addf %27, %26 : vector<8x128xf32>
    %29 = arith.divf %27, %28 : vector<8x128xf32>
    %c0_13 = arith.constant 0 : index
    %c0_14 = arith.constant 0 : index
    %30 = vector.load %arg3[%c0_13, %c0_14] : memref<8x128xf32, #tpu.memory_space<vmem>>, vector<8x128xf32>
    %31 = arith.mulf %30, %21 : vector<8x128xf32>
    %32 = arith.mulf %15, %23 : vector<8x128xf32>
    %33 = arith.addf %31, %32 : vector<8x128xf32>
    %34 = math.tanh %33 : vector<8x128xf32>
    %35 = arith.mulf %29, %34 : vector<8x128xf32>
    %c0_15 = arith.constant 0 : index
    %c0_16 = arith.constant 0 : index
    %36 = vector.load %arg8[%c0_15, %c0_16] : memref<8x128xf32, #tpu.memory_space<vmem>>, vector<8x128xf32>
    tpu.vector_store %arg8[%c0_15, %c0_16], %33 {strides = array<i32>} : memref<8x128xf32, #tpu.memory_space<vmem>>, vector<8x128xf32>,
    %c0_17 = arith.constant 0 : index
    %c0_18 = arith.constant 0 : index
    %37 = vector.load %arg7[%c0_17, %c0_18] : memref<8x128xf32, #tpu.memory_space<vmem>>, vector<8x128xf32>
    tpu.vector_store %arg7[%c0_17, %c0_18], %35 {strides = array<i32>} : memref<8x128xf32, #tpu.memory_space<vmem>>, vector<8x128xf32>,
    return
  }
  func.func @transform_0(%arg0: i32) -> (i32, i32) {
    %c0_i32 = arith.constant 0 : i32
    %c0_i32_0 = arith.constant 0 : i32
    return %arg0, %c0_i32 : i32, i32
  }
  func.func @transform_1(%arg0: i32) -> (i32, i32) {
    %c0_i32 = arith.constant 0 : i32
    %c0_i32_0 = arith.constant 0 : i32
    return %arg0, %c0_i32 : i32, i32
  }
  func.func @transform_2(%arg0: i32) -> (i32, i32) {
    %c0_i32 = arith.constant 0 : i32
    %c0_i32_0 = arith.constant 0 : i32
    return %arg0, %c0_i32 : i32, i32
  }
  func.func @transform_3(%arg0: i32) -> (i32, i32) {
    %c0_i32 = arith.constant 0 : i32
    %c0_i32_0 = arith.constant 0 : i32
    %c0_i32_1 = arith.constant 0 : i32
    return %c0_i32, %c0_i32_0 : i32, i32
  }
  func.func @transform_4(%arg0: i32) -> (i32, i32) {
    %c0_i32 = arith.constant 0 : i32
    %c0_i32_0 = arith.constant 0 : i32
    %c0_i32_1 = arith.constant 0 : i32
    return %c0_i32, %c0_i32_0 : i32, i32
  }
  func.func @transform_5(%arg0: i32) -> (i32, i32) {
    %c0_i32 = arith.constant 0 : i32
    %c0_i32_0 = arith.constant 0 : i32
    %c0_i32_1 = arith.constant 0 : i32
    return %c0_i32, %c0_i32_0 : i32, i32
  }
  func.func @transform_6(%arg0: i32) -> (i32, i32) {
    %c0_i32 = arith.constant 0 : i32
    %c0_i32_0 = arith.constant 0 : i32
    return %arg0, %c0_i32 : i32, i32
  }
  func.func @transform_7(%arg0: i32) -> (i32, i32) {
    %c0_i32 = arith.constant 0 : i32
    %c0_i32_0 = arith.constant 0 : i32
    return %arg0, %c0_i32 : i32, i32
  }
}

</mosaic_0001>

<llo_original>
// kernel: _lambda_.1
$region0: #{_lambda_.1}
  #allocation0 [shape = 'u32[]', space=smem, size = 0x4, offset = 0x4, fixed_abs, tag = 'smem constant byte address 0x4 - core index']
  #allocation1 [shape = 'u32[144,128]{1,0:T(1,128)}', space=vmem, size = 0x12000, scoped, tag = 'internal scratch']
  %s0 = inlined_call_operand.vmem [shape: bf16[8,128], index: 0, kind: input, shape index: {}]
  %s1 = inlined_call_operand.vmem [shape: bf16[8,128], index: 1, kind: input, shape index: {}]
  %s2 = inlined_call_operand.vmem [shape: f32[8,128], index: 2, kind: input, shape index: {}]
  %s3 = inlined_call_operand.hbm [shape: bf16[128,512], index: 3, kind: input, shape index: {}]
  %s4 = inlined_call_operand.hbm [shape: bf16[128,512], index: 4, kind: input, shape index: {}]
  %s5 = inlined_call_operand.vmem [shape: f32[1,512], index: 5, kind: input, shape index: {}]
  %s6 = inlined_call_operand.hbm [shape: f32[8,128], index: 6, kind: output, shape index: {0}]
  %s7 = inlined_call_operand.hbm [shape: f32[8,128], index: 7, kind: output, shape index: {1}]
  %8 = xla_tuple %s6, %s7
  %s9 = sld [smem:[#allocation0]]
  $region50: #{_lambda_.1} parent=0
    _
  %s11 = ssub.s32 1, %s9
  %s12 = scalar_select 0, %s11, %s9
  $region1: #{_lambda_.1} parent=0
    #allocation2 [shape = 'u8[131072]{0}', space=vmem, size = 0x20000, scoped, tag = 'input window, operand 3, single buffered']
    #allocation3 [shape = 's32[1]{0}', space=sflag, size = 0x4, scoped, tag = 'scoped memory for _lambda_.1']
    #allocation4 [shape = 's32[1]{0}', space=sflag, size = 0x4, scoped, tag = 'scoped memory for _lambda_.1']
    #allocation5 [shape = 'u8[131072]{0}', space=vmem, size = 0x20000, scoped, tag = 'input window, operand 4, single buffered']
    #allocation6 [shape = 's32[1]{0}', space=sflag, size = 0x4, scoped, tag = 'scoped memory for _lambda_.1']
    #allocation7 [shape = 'u8[4096]{0}', space=vmem, size = 0x1000, scoped, tag = 'output window, operand 0, single buffered']
    #allocation8 [shape = 'u8[4096]{0}', space=vmem, size = 0x1000, scoped, tag = 'output window, operand 1, single buffered']
    #allocation9 [shape = 's32[1]{0}', space=sflag, size = 0x4, scoped, tag = 'scoped memory for _lambda_.1']
    %13 = vsyncpa [#allocation3], 0
    %14 = vsyncpa [#allocation6], 0
    %15 = vsyncpa [#allocation4], 0
    %16 = vsyncpa [#allocation9], 0
    // Predicated region
    $region2: #{_lambda_.1} parent=1 // pred_check
      _
    $region3: #{_lambda_.1} parent=1 // pred_check_branch
      %18 = sbr.rel (0) target = $region5
    $region4: #{_lambda_.1} parent=1 // pred_region
      _
    $region5: #{_lambda_.1} parent=1 // pred_fallthru
      _
    // Predicated region
    $region6: #{_lambda_.1} parent=1 // pred_check
      _
    $region7: #{_lambda_.1} parent=1 // pred_check_branch
      %20 = sbr.rel (0) target = $region9
    $region8: #{_lambda_.1} parent=1 // pred_region
      _
    $region9: #{_lambda_.1} parent=1 // pred_fallthru
      _
    // Predicated region
    $region10: #{_lambda_.1} parent=1 // pred_check
      _
    $region11: #{_lambda_.1} parent=1 // pred_check_branch
      %22 = sbr.rel (0) target = $region13
    $region12: #{_lambda_.1} parent=1 // pred_region
      _
    $region13: #{_lambda_.1} parent=1 // pred_fallthru
      _
    // Predicated region
    $region14: #{_lambda_.1} parent=1 // pred_check
      _
    $region15: #{_lambda_.1} parent=1 // pred_check_branch
      %24 = sbr.rel (0) target = $region17
    $region16: #{_lambda_.1} parent=1 // pred_region
      %s26 = ssub.s32 4096, 4096
      %27 = vsyncadd [#allocation3], %s26
      %s28 = sshll.u32 [#allocation2], 4
      %s29 = int_to_ptr.vmem [resolvable:$true] %s28
      %34 = dma.hbm_to_vmem [thread:$0]  %s3, 4096, %s29, [#allocation3], 256, 256, 16
    $region17: #{_lambda_.1} parent=1 // pred_fallthru
      _
    // Predicated region
    $region18: #{_lambda_.1} parent=1 // pred_check
      _
    $region19: #{_lambda_.1} parent=1 // pred_check_branch
      %36 = sbr.rel (0) target = $region21
    $region20: #{_lambda_.1} parent=1 // pred_region
      %s38 = ssub.s32 4096, 4096
      %39 = vsyncadd [#allocation6], %s38
      %s40 = sshll.u32 [#allocation5], 4
      %s41 = int_to_ptr.vmem [resolvable:$true] %s40
      %46 = dma.hbm_to_vmem [thread:$0]  %s4, 4096, %s41, [#allocation6], 256, 256, 16
    $region21: #{_lambda_.1} parent=1 // pred_fallthru
      _
    // Predicated region
    $region22: #{_lambda_.1} parent=1 // pred_check
      _
    $region23: #{_lambda_.1} parent=1 // pred_check_branch
      %48 = sbr.rel (0) target = $region25
    $region24: #{_lambda_.1} parent=1 // pred_region
      _
    $region25: #{_lambda_.1} parent=1 // pred_fallthru
      _
    // Predicated region
    $region26: #{_lambda_.1} parent=1 // pred_check
      _
    $region27: #{_lambda_.1} parent=1 // pred_check_branch
      %50 = sbr.rel (0) target = $region29
    $region28: #{_lambda_.1} parent=1 // pred_region
      %51 = dma.done [#allocation3], 4096
    $region29: #{_lambda_.1} parent=1 // pred_fallthru
      _
    // Predicated region
    $region30: #{_lambda_.1} parent=1 // pred_check
      _
    $region31: #{_lambda_.1} parent=1 // pred_check_branch
      %53 = sbr.rel (0) target = $region33
    $region32: #{_lambda_.1} parent=1 // pred_region
      %54 = dma.done [#allocation6], 4096
    $region33: #{_lambda_.1} parent=1 // pred_fallthru
      _
    %v56 = vld [vmem:[%s0] sm:$0xf]
    %v57 = vld [vmem:[#allocation2] sm:$0xff]
    %v58 = vld [vmem:[#allocation2 + $0x8] sm:$0xff]
    %v59 = vld [vmem:[#allocation2 + $0x10] sm:$0xff]
    %v60 = vld [vmem:[#allocation2 + $0x18] sm:$0xff]
    %v61 = vld [vmem:[#allocation2 + $0x20] sm:$0xff]
    %v62 = vld [vmem:[#allocation2 + $0x28] sm:$0xff]
    %v63 = vld [vmem:[#allocation2 + $0x30] sm:$0xff]
    %v64 = vld [vmem:[#allocation2 + $0x38] sm:$0xff]
    %v65 = vld [vmem:[#allocation2 + $0x40] sm:$0xff]
    %v66 = vld [vmem:[#allocation2 + $0x48] sm:$0xff]
    %v67 = vld [vmem:[#allocation2 + $0x50] sm:$0xff]
    %v68 = vld [vmem:[#allocation2 + $0x58] sm:$0xff]
    %v69 = vld [vmem:[#allocation2 + $0x60] sm:$0xff]
    %v70 = vld [vmem:[#allocation2 + $0x68] sm:$0xff]
    %v71 = vld [vmem:[#allocation2 + $0x70] sm:$0xff]
    %v72 = vld [vmem:[#allocation2 + $0x78] sm:$0xff]
    %v73 = vld [vmem:[#allocation2 + $0x80] sm:$0xff]
    %v74 = vld [vmem:[#allocation2 + $0x88] sm:$0xff]
    %v75 = vld [vmem:[#allocation2 + $0x90] sm:$0xff]
    %v76 = vld [vmem:[#allocation2 + $0x98] sm:$0xff]
    %v77 = vld [vmem:[#allocation2 + $0xa0] sm:$0xff]
    %v78 = vld [vmem:[#allocation2 + $0xa8] sm:$0xff]
    %v79 = vld [vmem:[#allocation2 + $0xb0] sm:$0xff]
    %v80 = vld [vmem:[#allocation2 + $0xb8] sm:$0xff]
    %v81 = vld [vmem:[#allocation2 + $0xc0] sm:$0xff]
    %v82 = vld [vmem:[#allocation2 + $0xc8] sm:$0xff]
    %v83 = vld [vmem:[#allocation2 + $0xd0] sm:$0xff]
    %v84 = vld [vmem:[#allocation2 + $0xd8] sm:$0xff]
    %v85 = vld [vmem:[#allocation2 + $0xe0] sm:$0xff]
    %v86 = vld [vmem:[#allocation2 + $0xe8] sm:$0xff]
    %v87 = vld [vmem:[#allocation2 + $0xf0] sm:$0xff]
    %v88 = vld [vmem:[#allocation2 + $0xf8] sm:$0xff]
    %v89 = vld [vmem:[%s1] sm:$0xf]
    %v90 = vld [vmem:[#allocation5] sm:$0xff]
    %v91 = vld [vmem:[#allocation5 + $0x8] sm:$0xff]
    %v92 = vld [vmem:[#allocation5 + $0x10] sm:$0xff]
    %v93 = vld [vmem:[#allocation5 + $0x18] sm:$0xff]
    %v94 = vld [vmem:[#allocation5 + $0x20] sm:$0xff]
    %v95 = vld [vmem:[#allocation5 + $0x28] sm:$0xff]
    %v96 = vld [vmem:[#allocation5 + $0x30] sm:$0xff]
    %v97 = vld [vmem:[#allocation5 + $0x38] sm:$0xff]
    %v98 = vld [vmem:[#allocation5 + $0x40] sm:$0xff]
    %v99 = vld [vmem:[#allocation5 + $0x48] sm:$0xff]
    %v100 = vld [vmem:[#allocation5 + $0x50] sm:$0xff]
    %v101 = vld [vmem:[#allocation5 + $0x58] sm:$0xff]
    %v102 = vld [vmem:[#allocation5 + $0x60] sm:$0xff]
    %v103 = vld [vmem:[#allocation5 + $0x68] sm:$0xff]
    %v104 = vld [vmem:[#allocation5 + $0x70] sm:$0xff]
    %v105 = vld [vmem:[#allocation5 + $0x78] sm:$0xff]
    %v106 = vld [vmem:[#allocation5 + $0x80] sm:$0xff]
    %v107 = vld [vmem:[#allocation5 + $0x88] sm:$0xff]
    %v108 = vld [vmem:[#allocation5 + $0x90] sm:$0xff]
    %v109 = vld [vmem:[#allocation5 + $0x98] sm:$0xff]
    %v110 = vld [vmem:[#allocation5 + $0xa0] sm:$0xff]
    %v111 = vld [vmem:[#allocation5 + $0xa8] sm:$0xff]
    %v112 = vld [vmem:[#allocation5 + $0xb0] sm:$0xff]
    %v113 = vld [vmem:[#allocation5 + $0xb8] sm:$0xff]
    %v114 = vld [vmem:[#allocation5 + $0xc0] sm:$0xff]
    %v115 = vld [vmem:[#allocation5 + $0xc8] sm:$0xff]
    %v116 = vld [vmem:[#allocation5 + $0xd0] sm:$0xff]
    %v117 = vld [vmem:[#allocation5 + $0xd8] sm:$0xff]
    %v118 = vld [vmem:[#allocation5 + $0xe0] sm:$0xff]
    %v119 = vld [vmem:[#allocation5 + $0xe8] sm:$0xff]
    %v120 = vld [vmem:[#allocation5 + $0xf0] sm:$0xff]
    %v121 = vld [vmem:[#allocation5 + $0xf8] sm:$0xff]
    %v154 = vunpack.c.l.b16 %v90
    %v155 = vunpack.c.h.b16 %v90
    %v156 = vunpack.c.l.b16 %v91
    %v157 = vunpack.c.h.b16 %v91
    %v158 = vunpack.c.l.b16 %v92
    %v159 = vunpack.c.h.b16 %v92
    %v160 = vunpack.c.l.b16 %v93
    %v161 = vunpack.c.h.b16 %v93
    %v162 = vunpack.c.l.b16 %v94
    %v163 = vunpack.c.h.b16 %v94
    %v164 = vunpack.c.l.b16 %v95
    %v165 = vunpack.c.h.b16 %v95
    %v166 = vunpack.c.l.b16 %v96
    %v167 = vunpack.c.h.b16 %v96
    %v168 = vunpack.c.l.b16 %v97
    %v169 = vunpack.c.h.b16 %v97
    %v170 = vunpack.c.l.b16 %v98
    %v171 = vunpack.c.h.b16 %v98
    %v172 = vunpack.c.l.b16 %v99
    %v173 = vunpack.c.h.b16 %v99
    %v174 = vunpack.c.l.b16 %v100
    %v175 = vunpack.c.h.b16 %v100
    %v176 = vunpack.c.l.b16 %v101
    %v177 = vunpack.c.h.b16 %v101
    %v178 = vunpack.c.l.b16 %v102
    %v179 = vunpack.c.h.b16 %v102
    %v180 = vunpack.c.l.b16 %v103
    %v181 = vunpack.c.h.b16 %v103
    %v182 = vunpack.c.l.b16 %v104
    %v183 = vunpack.c.h.b16 %v104
    %v184 = vunpack.c.l.b16 %v105
    %v185 = vunpack.c.h.b16 %v105
    %v186 = vunpack.c.l.b16 %v106
    %v187 = vunpack.c.h.b16 %v106
    %v188 = vunpack.c.l.b16 %v107
    %v189 = vunpack.c.h.b16 %v107
    %v190 = vunpack.c.l.b16 %v108
    %v191 = vunpack.c.h.b16 %v108
    %v192 = vunpack.c.l.b16 %v109
    %v193 = vunpack.c.h.b16 %v109
    %v194 = vunpack.c.l.b16 %v110
    %v195 = vunpack.c.h.b16 %v110
    %v196 = vunpack.c.l.b16 %v111
    %v197 = vunpack.c.h.b16 %v111
    %v198 = vunpack.c.l.b16 %v112
    %v199 = vunpack.c.h.b16 %v112
    %v200 = vunpack.c.l.b16 %v113
    %v201 = vunpack.c.h.b16 %v113
    %v202 = vunpack.c.l.b16 %v114
    %v203 = vunpack.c.h.b16 %v114
    %v204 = vunpack.c.l.b16 %v115
    %v205 = vunpack.c.h.b16 %v115
    %v206 = vunpack.c.l.b16 %v116
    %v207 = vunpack.c.h.b16 %v116
    %v208 = vunpack.c.l.b16 %v117
    %v209 = vunpack.c.h.b16 %v117
    %v210 = vunpack.c.l.b16 %v118
    %v211 = vunpack.c.h.b16 %v118
    %v212 = vunpack.c.l.b16 %v119
    %v213 = vunpack.c.h.b16 %v119
    %v214 = vunpack.c.l.b16 %v120
    %v215 = vunpack.c.h.b16 %v120
    %v216 = vunpack.c.l.b16 %v121
    %v217 = vunpack.c.h.b16 %v121
    %v218 = vpack.c.b16 %v158, %v154
    %v219 = vpack.c.b16 %v159, %v155
    %v220 = vpack.c.b16 %v160, %v156
    %v221 = vpack.c.b16 %v161, %v157
    %v222 = vpack.c.b16 %v166, %v162
    %v223 = vpack.c.b16 %v167, %v163
    %v224 = vpack.c.b16 %v168, %v164
    %v225 = vpack.c.b16 %v169, %v165
    %v226 = vpack.c.b16 %v174, %v170
    %v227 = vpack.c.b16 %v175, %v171
    %v228 = vpack.c.b16 %v176, %v172
    %v229 = vpack.c.b16 %v177, %v173
    %v230 = vpack.c.b16 %v182, %v178
    %v231 = vpack.c.b16 %v183, %v179
    %v232 = vpack.c.b16 %v184, %v180
    %v233 = vpack.c.b16 %v185, %v181
    %v234 = vpack.c.b16 %v190, %v186
    %v235 = vpack.c.b16 %v191, %v187
    %v236 = vpack.c.b16 %v192, %v188
    %v237 = vpack.c.b16 %v193, %v189
    %v238 = vpack.c.b16 %v198, %v194
    %v239 = vpack.c.b16 %v199, %v195
    %v240 = vpack.c.b16 %v200, %v196
    %v241 = vpack.c.b16 %v201, %v197
    %v242 = vpack.c.b16 %v206, %v202
    %v243 = vpack.c.b16 %v207, %v203
    %v244 = vpack.c.b16 %v208, %v204
    %v245 = vpack.c.b16 %v209, %v205
    %v246 = vpack.c.b16 %v214, %v210
    %v247 = vpack.c.b16 %v215, %v211
    %v248 = vpack.c.b16 %v216, %v212
    %v249 = vpack.c.b16 %v217, %v213
    %282 = vmatprep.subr.bf16.mxu0 %v247
    %283 = vmatpush1.bf16.msra.mxu0 %v246
    %284 = vmatprep.subr.bf16.mxu0 %v243
    %285 = vmatpush1.bf16.msra.mxu0 %v242
    %286 = vmatprep.subr.bf16.mxu0 %v239
    %287 = vmatpush1.bf16.msra.mxu0 %v238
    %288 = vmatprep.subr.bf16.mxu0 %v235
    %289 = vmatpush1.bf16.msra.mxu0 %v234
    %290 = vmatprep.subr.bf16.mxu0 %v231
    %291 = vmatpush1.bf16.msra.mxu0 %v230
    %292 = vmatprep.subr.bf16.mxu0 %v227
    %293 = vmatpush1.bf16.msra.mxu0 %v226
    %294 = vmatprep.subr.bf16.mxu0 %v223
    %295 = vmatpush1.bf16.msra.mxu0 %v222
    %296 = vmatprep.subr.bf16.mxu0 %v219
    %297 = vmatpush1.bf16.msra.mxu0 %v218
    %298 = vmatprep.subr.bf16.mxu0 0
    %299 = vmatpush2.bf16.msra.mxu0 0
    %300 = vmatprep.subr.bf16.mxu0 0
    %301 = vmatpush2.bf16.msra.mxu0 0
    %302 = vmatprep.subr.bf16.mxu0 0
    %303 = vmatpush2.bf16.msra.mxu0 0
    %304 = vmatprep.subr.bf16.mxu0 0
    %305 = vmatpush2.bf16.msra.mxu0 0
    %306 = vmatprep.subr.bf16.mxu0 0
    %307 = vmatpush2.bf16.msra.mxu0 0
    %308 = vmatprep.subr.bf16.mxu0 0
    %309 = vmatpush2.bf16.msra.mxu0 0
    %310 = vmatprep.subr.bf16.mxu0 0
    %311 = vmatpush2.bf16.msra.mxu0 0
    %312 = vmatprep.subr.bf16.mxu0 0
    %313 = vmatpush2.bf16.msra.mxu0 0
    %314 = vmatprep.mubr.bf16.mxu0 0
    %315 = vmatmul.mubr.bf16.gmra.mxu0 %v89
    %v316 = vpop.f32.mrf.mxu0
    %v317 = vadd.f32 0.0, %v316
    %v318 = vpop.f32.mrf.mxu0
    %v319 = vadd.f32 0.0, %v318
    %v320 = vpop.f32.mrf.mxu0
    %v321 = vpop.f32.mrf.mxu0
    %322 = vdwg.mxu0
    %323 = vmatprep.subr.bf16.mxu0 %v249
    %324 = vmatpush1.bf16.msra.mxu0 %v248
    %325 = vmatprep.subr.bf16.mxu0 %v245
    %326 = vmatpush1.bf16.msra.mxu0 %v244
    %327 = vmatprep.subr.bf16.mxu0 %v241
    %328 = vmatpush1.bf16.msra.mxu0 %v240
    %329 = vmatprep.subr.bf16.mxu0 %v237
    %330 = vmatpush1.bf16.msra.mxu0 %v236
    %331 = vmatprep.subr.bf16.mxu0 %v233
    %332 = vmatpush1.bf16.msra.mxu0 %v232
    %333 = vmatprep.subr.bf16.mxu0 %v229
    %334 = vmatpush1.bf16.msra.mxu0 %v228
    %335 = vmatprep.subr.bf16.mxu0 %v225
    %336 = vmatpush1.bf16.msra.mxu0 %v224
    %337 = vmatprep.subr.bf16.mxu0 %v221
    %338 = vmatpush1.bf16.msra.mxu0 %v220
    %339 = vmatprep.subr.bf16.mxu0 0
    %340 = vmatpush2.bf16.msra.mxu0 0
    %341 = vmatprep.subr.bf16.mxu0 0
    %342 = vmatpush2.bf16.msra.mxu0 0
    %343 = vmatprep.subr.bf16.mxu0 0
    %344 = vmatpush2.bf16.msra.mxu0 0
    %345 = vmatprep.subr.bf16.mxu0 0
    %346 = vmatpush2.bf16.msra.mxu0 0
    %347 = vmatprep.subr.bf16.mxu0 0
    %348 = vmatpush2.bf16.msra.mxu0 0
    %349 = vmatprep.subr.bf16.mxu0 0
    %350 = vmatpush2.bf16.msra.mxu0 0
    %351 = vmatprep.subr.bf16.mxu0 0
    %352 = vmatpush2.bf16.msra.mxu0 0
    %353 = vmatprep.subr.bf16.mxu0 0
    %354 = vmatpush2.bf16.msra.mxu0 0
    %355 = vmatprep.mubr.bf16.mxu0 0
    %356 = vmatmul.mubr.bf16.gmra.mxu0 %v89
    %v357 = vpop.f32.mrf.mxu0
    %v358 = vadd.f32 0.0, %v357
    %v359 = vpop.f32.mrf.mxu0
    %v360 = vadd.f32 0.0, %v359
    %v361 = vpop.f32.mrf.mxu0
    %v362 = vpop.f32.mrf.mxu0
    %363 = vdwg.mxu0
    %v396 = vunpack.c.l.b16 %v57
    %v397 = vunpack.c.h.b16 %v57
    %v398 = vunpack.c.l.b16 %v58
    %v399 = vunpack.c.h.b16 %v58
    %v400 = vunpack.c.l.b16 %v59
    %v401 = vunpack.c.h.b16 %v59
    %v402 = vunpack.c.l.b16 %v60
    %v403 = vunpack.c.h.b16 %v60
    %v404 = vunpack.c.l.b16 %v61
    %v405 = vunpack.c.h.b16 %v61
    %v406 = vunpack.c.l.b16 %v62
    %v407 = vunpack.c.h.b16 %v62
    %v408 = vunpack.c.l.b16 %v63
    %v409 = vunpack.c.h.b16 %v63
    %v410 = vunpack.c.l.b16 %v64
    %v411 = vunpack.c.h.b16 %v64
    %v412 = vunpack.c.l.b16 %v65
    %v413 = vunpack.c.h.b16 %v65
    %v414 = vunpack.c.l.b16 %v66
    %v415 = vunpack.c.h.b16 %v66
    %v416 = vunpack.c.l.b16 %v67
    %v417 = vunpack.c.h.b16 %v67
    %v418 = vunpack.c.l.b16 %v68
    %v419 = vunpack.c.h.b16 %v68
    %v420 = vunpack.c.l.b16 %v69
    %v421 = vunpack.c.h.b16 %v69
    %v422 = vunpack.c.l.b16 %v70
    %v423 = vunpack.c.h.b16 %v70
    %v424 = vunpack.c.l.b16 %v71
    %v425 = vunpack.c.h.b16 %v71
    %v426 = vunpack.c.l.b16 %v72
    %v427 = vunpack.c.h.b16 %v72
    %v428 = vunpack.c.l.b16 %v73
    %v429 = vunpack.c.h.b16 %v73
    %v430 = vunpack.c.l.b16 %v74
    %v431 = vunpack.c.h.b16 %v74
    %v432 = vunpack.c.l.b16 %v75
    %v433 = vunpack.c.h.b16 %v75
    %v434 = vunpack.c.l.b16 %v76
    %v435 = vunpack.c.h.b16 %v76
    %v436 = vunpack.c.l.b16 %v77
    %v437 = vunpack.c.h.b16 %v77
    %v438 = vunpack.c.l.b16 %v78
    %v439 = vunpack.c.h.b16 %v78
    %v440 = vunpack.c.l.b16 %v79
    %v441 = vunpack.c.h.b16 %v79
    %v442 = vunpack.c.l.b16 %v80
    %v443 = vunpack.c.h.b16 %v80
    %v444 = vunpack.c.l.b16 %v81
    %v445 = vunpack.c.h.b16 %v81
    %v446 = vunpack.c.l.b16 %v82
    %v447 = vunpack.c.h.b16 %v82
    %v448 = vunpack.c.l.b16 %v83
    %v449 = vunpack.c.h.b16 %v83
    %v450 = vunpack.c.l.b16 %v84
    %v451 = vunpack.c.h.b16 %v84
    %v452 = vunpack.c.l.b16 %v85
    %v453 = vunpack.c.h.b16 %v85
    %v454 = vunpack.c.l.b16 %v86
    %v455 = vunpack.c.h.b16 %v86
    %v456 = vunpack.c.l.b16 %v87
    %v457 = vunpack.c.h.b16 %v87
    %v458 = vunpack.c.l.b16 %v88
    %v459 = vunpack.c.h.b16 %v88
    %v460 = vpack.c.b16 %v400, %v396
    %v461 = vpack.c.b16 %v401, %v397
    %v462 = vpack.c.b16 %v402, %v398
    %v463 = vpack.c.b16 %v403, %v399
    %v464 = vpack.c.b16 %v408, %v404
    %v465 = vpack.c.b16 %v409, %v405
    %v466 = vpack.c.b16 %v410, %v406
    %v467 = vpack.c.b16 %v411, %v407
    %v468 = vpack.c.b16 %v416, %v412
    %v469 = vpack.c.b16 %v417, %v413
    %v470 = vpack.c.b16 %v418, %v414
    %v471 = vpack.c.b16 %v419, %v415
    %v472 = vpack.c.b16 %v424, %v420
    %v473 = vpack.c.b16 %v425, %v421
    %v474 = vpack.c.b16 %v426, %v422
    %v475 = vpack.c.b16 %v427, %v423
    %v476 = vpack.c.b16 %v432, %v428
    %v477 = vpack.c.b16 %v433, %v429
    %v478 = vpack.c.b16 %v434, %v430
    %v479 = vpack.c.b16 %v435, %v431
    %v480 = vpack.c.b16 %v440, %v436
    %v481 = vpack.c.b16 %v441, %v437
    %v482 = vpack.c.b16 %v442, %v438
    %v483 = vpack.c.b16 %v443, %v439
    %v484 = vpack.c.b16 %v448, %v444
    %v485 = vpack.c.b16 %v449, %v445
    %v486 = vpack.c.b16 %v450, %v446
    %v487 = vpack.c.b16 %v451, %v447
    %v488 = vpack.c.b16 %v456, %v452
    %v489 = vpack.c.b16 %v457, %v453
    %v490 = vpack.c.b16 %v458, %v454
    %v491 = vpack.c.b16 %v459, %v455
    %524 = vmatprep.subr.bf16.mxu0 %v489
    %525 = vmatpush1.bf16.msra.mxu0 %v488
    %526 = vmatprep.subr.bf16.mxu0 %v485
    %527 = vmatpush1.bf16.msra.mxu0 %v484
    %528 = vmatprep.subr.bf16.mxu0 %v481
    %529 = vmatpush1.bf16.msra.mxu0 %v480
    %530 = vmatprep.subr.bf16.mxu0 %v477
    %531 = vmatpush1.bf16.msra.mxu0 %v476
    %532 = vmatprep.subr.bf16.mxu0 %v473
    %533 = vmatpush1.bf16.msra.mxu0 %v472
    %534 = vmatprep.subr.bf16.mxu0 %v469
    %535 = vmatpush1.bf16.msra.mxu0 %v468
    %536 = vmatprep.subr.bf16.mxu0 %v465
    %537 = vmatpush1.bf16.msra.mxu0 %v464
    %538 = vmatprep.subr.bf16.mxu0 %v461
    %539 = vmatpush1.bf16.msra.mxu0 %v460
    %540 = vmatprep.subr.bf16.mxu0 0
    %541 = vmatpush2.bf16.msra.mxu0 0
    %542 = vmatprep.subr.bf16.mxu0 0
    %543 = vmatpush2.bf16.msra.mxu0 0
    %544 = vmatprep.subr.bf16.mxu0 0
    %545 = vmatpush2.bf16.msra.mxu0 0
    %546 = vmatprep.subr.bf16.mxu0 0
    %547 = vmatpush2.bf16.msra.mxu0 0
    %548 = vmatprep.subr.bf16.mxu0 0
    %549 = vmatpush2.bf16.msra.mxu0 0
    %550 = vmatprep.subr.bf16.mxu0 0
    %551 = vmatpush2.bf16.msra.mxu0 0
    %552 = vmatprep.subr.bf16.mxu0 0
    %553 = vmatpush2.bf16.msra.mxu0 0
    %554 = vmatprep.subr.bf16.mxu0 0
    %555 = vmatpush2.bf16.msra.mxu0 0
    %556 = vmatprep.mubr.bf16.mxu0 0
    %557 = vmatmul.mubr.bf16.gmra.mxu0 %v56
    %v558 = vpop.f32.mrf.mxu0
    %v559 = vadd.f32 %v317, %v558
    %v560 = vpop.f32.mrf.mxu0
    %v561 = vadd.f32 %v319, %v560
    %v562 = vpop.f32.mrf.mxu0
    %v563 = vpop.f32.mrf.mxu0
    %564 = vdwg.mxu0
    %565 = vmatprep.subr.bf16.mxu0 %v491
    %566 = vmatpush1.bf16.msra.mxu0 %v490
    %567 = vmatprep.subr.bf16.mxu0 %v487
    %568 = vmatpush1.bf16.msra.mxu0 %v486
    %569 = vmatprep.subr.bf16.mxu0 %v483
    %570 = vmatpush1.bf16.msra.mxu0 %v482
    %571 = vmatprep.subr.bf16.mxu0 %v479
    %572 = vmatpush1.bf16.msra.mxu0 %v478
    %573 = vmatprep.subr.bf16.mxu0 %v475
    %574 = vmatpush1.bf16.msra.mxu0 %v474
    %575 = vmatprep.subr.bf16.mxu0 %v471
    %576 = vmatpush1.bf16.msra.mxu0 %v470
    %577 = vmatprep.subr.bf16.mxu0 %v467
    %578 = vmatpush1.bf16.msra.mxu0 %v466
    %579 = vmatprep.subr.bf16.mxu0 %v463
    %580 = vmatpush1.bf16.msra.mxu0 %v462
    %581 = vmatprep.subr.bf16.mxu0 0
    %582 = vmatpush2.bf16.msra.mxu0 0
    %583 = vmatprep.subr.bf16.mxu0 0
    %584 = vmatpush2.bf16.msra.mxu0 0
    %585 = vmatprep.subr.bf16.mxu0 0
    %586 = vmatpush2.bf16.msra.mxu0 0
    %587 = vmatprep.subr.bf16.mxu0 0
    %588 = vmatpush2.bf16.msra.mxu0 0
    %589 = vmatprep.subr.bf16.mxu0 0
    %590 = vmatpush2.bf16.msra.mxu0 0
    %591 = vmatprep.subr.bf16.mxu0 0
    %592 = vmatpush2.bf16.msra.mxu0 0
    %593 = vmatprep.subr.bf16.mxu0 0
    %594 = vmatpush2.bf16.msra.mxu0 0
    %595 = vmatprep.subr.bf16.mxu0 0
    %596 = vmatpush2.bf16.msra.mxu0 0
    %597 = vmatprep.mubr.bf16.mxu0 0
    %598 = vmatmul.mubr.bf16.gmra.mxu0 %v56
    %v599 = vpop.f32.mrf.mxu0
    %v600 = vadd.f32 %v358, %v599
    %v601 = vpop.f32.mrf.mxu0
    %v602 = vadd.f32 %v360, %v601
    %v603 = vpop.f32.mrf.mxu0
    %v604 = vpop.f32.mrf.mxu0
    %605 = vdwg.mxu0
    %v606 = vld [vmem:[%s5] sm:$0xf]
    %v608 = vlaneseq
    %v609 = vshrl.u32 %v608, 7
    %v610 = vsub.s32 0, %v609
    %v611 = vrot.slane %v606, %v610
    %v612 = vlaneseq
    %v613 = vshrl.u32 %v612, 7
    %v614 = vsub.s32 1, %v613
    %v615 = vrot.slane %v606, %v614
    %v616 = vlaneseq
    %v617 = vshrl.u32 %v616, 7
    %v618 = vsub.s32 2, %v617
    %v619 = vrot.slane %v606, %v618
    %v620 = vlaneseq
    %v621 = vshrl.u32 %v620, 7
    %v622 = vsub.s32 3, %v621
    %v623 = vrot.slane %v606, %v622
    %v628 = vadd.f32 %v559, %v611
    %v629 = vadd.f32 %v561, %v615
    %v630 = vadd.f32 %v600, %v619
    %v631 = vadd.f32 %v602, %v623
    %v632 = vxor.u32 %v628, 2147483648
    %v633 = vmul.f32 %v632, 1.442695
    %v634 = vpow.pop %v633
    %v635 = vadd.f32 %v634, 1.0
    %v636 = vrcp.pop %v635
    %v637 = vmul.f32 1.0, %v636
    %v638 = vxor.u32 %v629, 2147483648
    %v639 = vmul.f32 %v638, 1.442695
    %v640 = vpow.pop %v639
    %v641 = vadd.f32 %v640, 1.0
    %v642 = vrcp.pop %v641
    %v643 = vmul.f32 1.0, %v642
    %v644 = vtanh.pop %v630
    %v645 = vxor.u32 %v631, 2147483648
    %v646 = vmul.f32 %v645, 1.442695
    %v647 = vpow.pop %v646
    %v648 = vadd.f32 %v647, 1.0
    %v649 = vrcp.pop %v648
    %v650 = vmul.f32 1.0, %v649
    %v651 = vld [vmem:[%s2] sm:$0xff]
    %v652 = vmul.f32 %v651, %v643
    %v653 = vmul.f32 %v637, %v644
    %v654 = vadd.f32 %v652, %v653
    %v655 = vtanh.pop %v654
    %v656 = vmul.f32 %v650, %v655
    %657 = vst [vmem:[#allocation8] sm:$0xff] %v654
    %658 = vst [vmem:[#allocation7] sm:$0xff] %v656
    // Predicated region
    $region34: #{_lambda_.1} parent=1 // pred_check
      _
    $region35: #{_lambda_.1} parent=1 // pred_check_branch
      %660 = sbr.rel (0) target = $region37
    $region36: #{_lambda_.1} parent=1 // pred_region
      %s662 = ssub.s32 128, 128
      %663 = vsyncadd [#allocation4], %s662
      %s665 = sshll.u32 [#allocation7], 4
      %s666 = int_to_ptr.vmem [resolvable:$true] %s665
      %668 = dma.vmem_to_hbm [thread:$0]  %s666, 128, %s6, [#allocation4]
    $region37: #{_lambda_.1} parent=1 // pred_fallthru
      _
    // Predicated region
    $region38: #{_lambda_.1} parent=1 // pred_check
      _
    $region39: #{_lambda_.1} parent=1 // pred_check_branch
      %670 = sbr.rel (0) target = $region41
    $region40: #{_lambda_.1} parent=1 // pred_region
      %s672 = ssub.s32 128, 128
      %673 = vsyncadd [#allocation9], %s672
      %s675 = sshll.u32 [#allocation8], 4
      %s676 = int_to_ptr.vmem [resolvable:$true] %s675
      %678 = dma.vmem_to_hbm [thread:$0]  %s676, 128, %s7, [#allocation9]
    $region41: #{_lambda_.1} parent=1 // pred_fallthru
      _
    // Predicated region
    $region42: #{_lambda_.1} parent=1 // pred_check
      _
    $region43: #{_lambda_.1} parent=1 // pred_check_branch
      %680 = sbr.rel (0) target = $region45
    $region44: #{_lambda_.1} parent=1 // pred_region
      %681 = dma.done [#allocation4], 128
    $region45: #{_lambda_.1} parent=1 // pred_fallthru
      _
    // Predicated region
    $region46: #{_lambda_.1} parent=1 // pred_check
      _
    $region47: #{_lambda_.1} parent=1 // pred_check_branch
      %683 = sbr.rel (0) target = $region49
    $region48: #{_lambda_.1} parent=1 // pred_region
      %684 = dma.done [#allocation9], 128
    $region49: #{_lambda_.1} parent=1 // pred_fallthru
      _
    %685 = vsyncpa [#allocation3], 1
    %686 = vsyncpa [#allocation6], 1
    %687 = vsyncpa [#allocation4], 1
    %688 = vsyncpa [#allocation9], 1

</llo_original>
